<compile_context>
chip_gen: v7x
topology: tpu7x:2x2x1
jax: 0.10.0
libtpu: 0.0.40
codegen_flags: <defaults>
</compile_context>

<pallas_src>
import functools

import jax
import jax.numpy as jnp
from jax.experimental import pallas as pl
from jax.experimental.pallas import tpu as pltpu

# ----- packed-parameter layout (all feature dims padded to 128 lanes) -------
PAD = 128                 # lane width; every feature dim (16/64/32/2) <= 128
NEG_INF = -1e30           # class-mask value baked into padded lanes of b3
W1_OFF = 0                # rows [0, 128)    : w1 padded to (128, 128)
B1_OFF = 128              # row  128         : b1 padded to (1, 128) (8-row slot)
W2_OFF = 136              # rows [136, 264)  : w2 padded
B2_OFF = 264              # row  264         : b2 padded
W3_OFF = 272              # rows [272, 400)  : w3 padded
B3_OFF = 400              # row  400         : b3 padded (+ NEG_INF class mask)
PARAM_ROWS = 408          # 3*128 + 3*8  (8-row-aligned bias slots)


def _pack_params(w1, b1, w2, b2, w3, b3):
    """Pack all weights/biases into one lane-dense (PARAM_ROWS, 128) f32 slab."""
    def pad_w(w):
        r, c = w.shape
        return jnp.zeros((PAD, PAD), jnp.float32).at[:r, :c].set(w.astype(jnp.float32))

    def pad_b(b, fill=0.0):
        b = jnp.asarray(b, jnp.float32).reshape(1, -1)
        slab = jnp.full((8, PAD), 0.0, jnp.float32)
        # Row 0 carries the bias; lanes >= width carry `fill` (0 or NEG_INF).
        row = jnp.full((1, PAD), fill, jnp.float32).at[0, : b.shape[1]].set(b[0])
        return slab.at[0:1, :].set(row)

    return jnp.concatenate(
        [pad_w(w1), pad_b(b1), pad_w(w2), pad_b(b2), pad_w(w3), pad_b(b3, fill=NEG_INF)],
        axis=0,
    )


def mlp2layer_kernel(x_ref, p_ref, o_ref, *, compute_dtype):
    x = x_ref[...].astype(compute_dtype)                       # (TB, 128)

    w1 = p_ref[W1_OFF:W1_OFF + PAD, :].astype(compute_dtype)   # (128, 128)
    b1 = p_ref[B1_OFF:B1_OFF + 1, :]                           # (1, 128) f32
    w2 = p_ref[W2_OFF:W2_OFF + PAD, :].astype(compute_dtype)
    b2 = p_ref[B2_OFF:B2_OFF + 1, :]
    w3 = p_ref[W3_OFF:W3_OFF + PAD, :].astype(compute_dtype)
    b3 = p_ref[B3_OFF:B3_OFF + 1, :]                           # padded lanes = -1e30

    # fc1 + ReLU  (padded lanes of w1/b1 are zero -> padded lanes of h1 are 0)
    h1 = jnp.dot(x, w1, preferred_element_type=jnp.float32) + b1
    h1 = jnp.maximum(h1, 0.0)

    # fc2 + ReLU
    h2 = jnp.dot(h1.astype(compute_dtype), w2, preferred_element_type=jnp.float32) + b2
    h2 = jnp.maximum(h2, 0.0)

    # fc3: padded class lanes get 0 + (-1e30) from b3, i.e. pre-masked logits.
    logits = jnp.dot(h2.astype(compute_dtype), w3, preferred_element_type=jnp.float32) + b3

    # log_softmax over the class axis (padded lanes contribute exp(.) = 0).
    m = jnp.max(logits, axis=-1, keepdims=True)
    shifted = logits - m
    lse = jnp.log(jnp.sum(jnp.exp(shifted), axis=-1, keepdims=True))
    o_ref[...] = (shifted - lse).astype(o_ref.dtype)


def mlp2layer_forward(x, w1, b1, w2, b2, w3, b3,
                      batch_tile=256, compute_dtype=jnp.float32):
    """x: (B, in_dim) f32; w_i pre-transposed (in, out); b_i shaped (out,) or (1, out)."""
    B, in_dim = x.shape
    out_dim = w3.shape[1]
    assert max(in_dim, w1.shape[1], w2.shape[1], out_dim) <= PAD, \
        "this packing assumes every feature dim <= 128"
    assert batch_tile % 8 == 0, "batch_tile must be a multiple of 8 (sublane)"

    params = _pack_params(w1, b1, w2, b2, w3, b3)              # (408, 128) f32

    # Batch tiling: pad B to a multiple of 8 (sublane), then to the tile size.
    b_pad = ((B + 7) // 8) * 8
    tb = min(batch_tile, b_pad)
    b_pad = ((b_pad + tb - 1) // tb) * tb
    xp = jnp.zeros((b_pad, PAD), jnp.float32).at[:B, :in_dim].set(x.astype(jnp.float32))

    kernel = functools.partial(mlp2layer_kernel, compute_dtype=compute_dtype)

    out_padded = pl.pallas_call(
        kernel,
        out_shape=jax.ShapeDtypeStruct((b_pad, PAD), jnp.float32),
        grid=(b_pad // tb,),
        in_specs=[
            pl.BlockSpec((tb, PAD), lambda i: (i, 0)),          # batch tile of x
            pl.BlockSpec((PARAM_ROWS, PAD), lambda i: (0, 0)),  # params resident in VMEM
        ],
        out_specs=pl.BlockSpec((tb, PAD), lambda i: (i, 0)),    # lane-dense output slab
        compiler_params=pltpu.CompilerParams(
            dimension_semantics=("parallel",),                  # shard batch tiles (v7x: 2 TCs)
        ),
    )(xp, params)

    return out_padded[:B, :out_dim]


def reference_forward(x, w1, b1, w2, b2, w3, b3):
    h1 = jnp.maximum(x @ w1 + b1, 0.0)
    h2 = jnp.maximum(h1 @ w2 + b2, 0.0)
    logits = h2 @ w3 + b3
    return jax.nn.log_softmax(logits, axis=1)


if __name__ == "__main__":
    # Shapes implied by MLP2Layer(in_dim, out_dim, layer_list=[64, 32])
    B, in_dim, h1_dim, h2_dim, out_dim = 8, 16, 64, 32, 2

    key = jax.random.PRNGKey(0)
    kx, k1, k2, k3, kb1, kb2, kb3 = jax.random.split(key, 7)

    x = jax.random.normal(kx, (B, in_dim), dtype=jnp.float32)

    # Deterministic parameter init (uniform, scaled like torch Linear's default bound).
    def lin_init(kw, kb, fan_in, fan_out):
        bound = 1.0 / jnp.sqrt(fan_in)
        w = jax.random.uniform(kw, (fan_in, fan_out), jnp.float32, -bound, bound)
        b = jax.random.uniform(kb, (1, fan_out), jnp.float32, -bound, bound)
        return w, b

    w1, b1 = lin_init(k1, kb1, in_dim, h1_dim)
    w2, b2 = lin_init(k2, kb2, h1_dim, h2_dim)
    w3, b3 = lin_init(k3, kb3, h2_dim, out_dim)

    fwd = jax.jit(mlp2layer_forward, static_argnames=("batch_tile", "compute_dtype"))
    out = fwd(x, w1, b1, w2, b2, w3, b3)
    out = jax.block_until_ready(out)

    ref = reference_forward(x, w1, b1, w2, b2, w3, b3)
    assert out.shape == (B, out_dim)
    assert jnp.allclose(out, ref, atol=1e-5, rtol=1e-5), "mismatch vs JAX reference"

    # TODO(synk): at B=8 this op is pure launch/DMA overhead; for production use at
    # tiny batch a plain jitted XLA expression (no pallas_call) is the cheaper path.
    print("KERNEL_OK")
</pallas_src>

<mosaic_0001>
module attributes {stable_mosaic.version = 11 : i64} {
  func.func @mlp2layer_kernel(%arg0: i32, %arg1: memref<8x128xf32, #tpu.memory_space<vmem>>, %arg2: memref<408x128xf32, #tpu.memory_space<vmem>>, %arg3: memref<8x128xf32, #tpu.memory_space<vmem>>) attributes {dimension_semantics = [#tpu.dimension_semantics<parallel>], iteration_bounds = array<i64: 1>, scalar_prefetch = 0 : i64, scratch_operands = 0 : i64, tpu.core_type = #tpu.core_type<tc>, window_params = [{transform_indices = @transform_0, window_bounds = array<i64: 8, 128>}, {pipeline_mode = #tpu.pipeline_mode<synchronous>, transform_indices = @transform_1, window_bounds = array<i64: 408, 128>}, {transform_indices = @transform_2, window_bounds = array<i64: 8, 128>}]} {
    %c0 = arith.constant 0 : index
    %c0_0 = arith.constant 0 : index
    %0 = vector.load %arg1[%c0, %c0_0] : memref<8x128xf32, #tpu.memory_space<vmem>>, vector<8x128xf32>
    %c0_1 = arith.constant 0 : index
    %c0_2 = arith.constant 0 : index
    %1 = vector.load %arg2[%c0_1, %c0_2] : memref<408x128xf32, #tpu.memory_space<vmem>>, vector<128x128xf32>
    %c128 = arith.constant 128 : index
    %c0_3 = arith.constant 0 : index
    %2 = vector.load %arg2[%c128, %c0_3] : memref<408x128xf32, #tpu.memory_space<vmem>>, vector<1x128xf32>
    %c136 = arith.constant 136 : index
    %c0_4 = arith.constant 0 : index
    %3 = vector.load %arg2[%c136, %c0_4] : memref<408x128xf32, #tpu.memory_space<vmem>>, vector<128x128xf32>
    %c264 = arith.constant 264 : index
    %c0_5 = arith.constant 0 : index
    %4 = vector.load %arg2[%c264, %c0_5] : memref<408x128xf32, #tpu.memory_space<vmem>>, vector<1x128xf32>
    %c272 = arith.constant 272 : index
    %c0_6 = arith.constant 0 : index
    %5 = vector.load %arg2[%c272, %c0_6] : memref<408x128xf32, #tpu.memory_space<vmem>>, vector<128x128xf32>
    %c400 = arith.constant 400 : index
    %c0_7 = arith.constant 0 : index
    %6 = vector.load %arg2[%c400, %c0_7] : memref<408x128xf32, #tpu.memory_space<vmem>>, vector<1x128xf32>
    %cst = arith.constant dense<0.000000e+00> : vector<8x128xf32>
    %7 = tpu.matmul %0, %1, %cst {dimension_numbers = #tpu.dot_dimension_numbers<[1], [0], [0], [1], [0, 0, 1, 1], [], []>} : vector<8x128xf32>, vector<128x128xf32>, vector<8x128xf32> -> vector<8x128xf32>
    %8 = vector.broadcast %2 : vector<1x128xf32> to vector<8x128xf32>
    %9 = arith.addf %7, %8 : vector<8x128xf32>
    %cst_8 = arith.constant 0.000000e+00 : f32
    %10 = vector.broadcast %cst_8 : f32 to vector<8x128xf32>
    %11 = arith.maximumf %9, %10 : vector<8x128xf32>
    %cst_9 = arith.constant dense<0.000000e+00> : vector<8x128xf32>
    %12 = tpu.matmul %11, %3, %cst_9 {dimension_numbers = #tpu.dot_dimension_numbers<[1], [0], [0], [1], [0, 0, 1, 1], [], []>} : vector<8x128xf32>, vector<128x128xf32>, vector<8x128xf32> -> vector<8x128xf32>
    %13 = vector.broadcast %4 : vector<1x128xf32> to vector<8x128xf32>
    %14 = arith.addf %12, %13 : vector<8x128xf32>
    %cst_10 = arith.constant 0.000000e+00 : f32
    %15 = vector.broadcast %cst_10 : f32 to vector<8x128xf32>
    %16 = arith.maximumf %14, %15 : vector<8x128xf32>
    %cst_11 = arith.constant dense<0.000000e+00> : vector<8x128xf32>
    %17 = tpu.matmul %16, %5, %cst_11 {dimension_numbers = #tpu.dot_dimension_numbers<[1], [0], [0], [1], [0, 0, 1, 1], [], []>} : vector<8x128xf32>, vector<128x128xf32>, vector<8x128xf32> -> vector<8x128xf32>
    %18 = vector.broadcast %6 : vector<1x128xf32> to vector<8x128xf32>
    %19 = arith.addf %17, %18 : vector<8x128xf32>
    %cst_12 = arith.constant dense<0xFF800000> : vector<8xf32>
    %20 = vector.multi_reduction <maximumf>, %19, %cst_12 [1] : vector<8x128xf32> to vector<8xf32>
    %21 = vector.shape_cast %20 : vector<8xf32> to vector<8x1xf32>
    %22 = vector.broadcast %21 : vector<8x1xf32> to vector<8x128xf32>
    %23 = arith.subf %19, %22 : vector<8x128xf32>
    %24 = math.exp %23 : vector<8x128xf32>
    %cst_13 = arith.constant dense<0.000000e+00> : vector<8xf32>
    %25 = vector.multi_reduction <add>, %24, %cst_13 [1] : vector<8x128xf32> to vector<8xf32>
    %26 = vector.shape_cast %25 : vector<8xf32> to vector<8x1xf32>
    %27 = math.log %26 : vector<8x1xf32>
    %28 = vector.broadcast %27 : vector<8x1xf32> to vector<8x128xf32>
    %29 = arith.subf %23, %28 : vector<8x128xf32>
    %c0_14 = arith.constant 0 : index
    %c0_15 = arith.constant 0 : index
    %30 = vector.load %arg3[%c0_14, %c0_15] : memref<8x128xf32, #tpu.memory_space<vmem>>, vector<8x128xf32>
    tpu.vector_store %arg3[%c0_14, %c0_15], %29 {strides = array<i32>} : memref<8x128xf32, #tpu.memory_space<vmem>>, vector<8x128xf32>,
    return
  }
  func.func @transform_0(%arg0: i32) -> (i32, i32) {
    %c0_i32 = arith.constant 0 : i32
    %c0_i32_0 = arith.constant 0 : i32
    return %arg0, %c0_i32 : i32, i32
  }
  func.func @transform_1(%arg0: i32) -> (i32, i32) {
    %c0_i32 = arith.constant 0 : i32
    %c0_i32_0 = arith.constant 0 : i32
    %c0_i32_1 = arith.constant 0 : i32
    return %c0_i32, %c0_i32_0 : i32, i32
  }
  func.func @transform_2(%arg0: i32) -> (i32, i32) {
    %c0_i32 = arith.constant 0 : i32
    %c0_i32_0 = arith.constant 0 : i32
    return %arg0, %c0_i32 : i32, i32
  }
}

</mosaic_0001>

<llo_original>
// kernel: mlp2layer_forward.1
$region0: #{mlp2layer_forward.1}
  #allocation0 [shape = 'u32[]', space=smem, size = 0x4, offset = 0x4, fixed_abs, tag = 'smem constant byte address 0x4 - core index']
  #allocation1 [shape = 'u32[144,128]{1,0:T(1,128)}', space=vmem, size = 0x12000, scoped, tag = 'internal scratch']
  %s0 = inlined_call_operand.vmem [shape: f32[8,128], index: 0, kind: input, shape index: {}]
  %s1 = inlined_call_operand.vmem [shape: f32[408,128], index: 1, kind: input, shape index: {}]
  %s2 = inlined_call_operand.vmem [shape: f32[8,128], index: 2, kind: output, shape index: {}]
  %s3 = sld [smem:[#allocation0]]
  $region18: #{mlp2layer_forward.1} parent=0
    _
  %s5 = ssub.s32 1, %s3
  %s6 = scalar_select 0, %s5, %s3
  // Predicated region
  $region2: #{mlp2layer_forward.1} parent=0 // pred_check
    _
  $region3: #{mlp2layer_forward.1} parent=0 // pred_check_branch
    %8 = sbr.rel (0) target = $region5
  $region4: #{mlp2layer_forward.1} parent=0 // pred_region
    _
  $region5: #{mlp2layer_forward.1} parent=0 // pred_fallthru
    _
  // Predicated region
  $region6: #{mlp2layer_forward.1} parent=0 // pred_check
    _
  $region7: #{mlp2layer_forward.1} parent=0 // pred_check_branch
    %10 = sbr.rel (0) target = $region9
  $region8: #{mlp2layer_forward.1} parent=0 // pred_region
    _
  $region9: #{mlp2layer_forward.1} parent=0 // pred_fallthru
    _
  %v11 = vld [vmem:[%s0] sm:$0xff]
  %v12 = vld [vmem:[%s1] sm:$0xff]
  %v13 = vld [vmem:[%s1 + $0x8] sm:$0xff]
  %v14 = vld [vmem:[%s1 + $0x10] sm:$0xff]
  %v15 = vld [vmem:[%s1 + $0x18] sm:$0xff]
  %v16 = vld [vmem:[%s1 + $0x20] sm:$0xff]
  %v17 = vld [vmem:[%s1 + $0x28] sm:$0xff]
  %v18 = vld [vmem:[%s1 + $0x30] sm:$0xff]
  %v19 = vld [vmem:[%s1 + $0x38] sm:$0xff]
  %v20 = vld [vmem:[%s1 + $0x40] sm:$0xff]
  %v21 = vld [vmem:[%s1 + $0x48] sm:$0xff]
  %v22 = vld [vmem:[%s1 + $0x50] sm:$0xff]
  %v23 = vld [vmem:[%s1 + $0x58] sm:$0xff]
  %v24 = vld [vmem:[%s1 + $0x60] sm:$0xff]
  %v25 = vld [vmem:[%s1 + $0x68] sm:$0xff]
  %v26 = vld [vmem:[%s1 + $0x70] sm:$0xff]
  %v27 = vld [vmem:[%s1 + $0x78] sm:$0xff]
  %v28 = vld [vmem:[%s1 + $0x80] sm:$0x1]
  %v29 = vld [vmem:[%s1 + $0x88] sm:$0xff]
  %v30 = vld [vmem:[%s1 + $0x90] sm:$0xff]
  %v31 = vld [vmem:[%s1 + $0x98] sm:$0xff]
  %v32 = vld [vmem:[%s1 + $0xa0] sm:$0xff]
  %v33 = vld [vmem:[%s1 + $0xa8] sm:$0xff]
  %v34 = vld [vmem:[%s1 + $0xb0] sm:$0xff]
  %v35 = vld [vmem:[%s1 + $0xb8] sm:$0xff]
  %v36 = vld [vmem:[%s1 + $0xc0] sm:$0xff]
  %v37 = vld [vmem:[%s1 + $0xc8] sm:$0xff]
  %v38 = vld [vmem:[%s1 + $0xd0] sm:$0xff]
  %v39 = vld [vmem:[%s1 + $0xd8] sm:$0xff]
  %v40 = vld [vmem:[%s1 + $0xe0] sm:$0xff]
  %v41 = vld [vmem:[%s1 + $0xe8] sm:$0xff]
  %v42 = vld [vmem:[%s1 + $0xf0] sm:$0xff]
  %v43 = vld [vmem:[%s1 + $0xf8] sm:$0xff]
  %v44 = vld [vmem:[%s1 + $0x100] sm:$0xff]
  %v45 = vld [vmem:[%s1 + $0x108] sm:$0x1]
  %v46 = vld [vmem:[%s1 + $0x110] sm:$0xff]
  %v47 = vld [vmem:[%s1 + $0x118] sm:$0xff]
  %v48 = vld [vmem:[%s1 + $0x120] sm:$0xff]
  %v49 = vld [vmem:[%s1 + $0x128] sm:$0xff]
  %v50 = vld [vmem:[%s1 + $0x130] sm:$0xff]
  %v51 = vld [vmem:[%s1 + $0x138] sm:$0xff]
  %v52 = vld [vmem:[%s1 + $0x140] sm:$0xff]
  %v53 = vld [vmem:[%s1 + $0x148] sm:$0xff]
  %v54 = vld [vmem:[%s1 + $0x150] sm:$0xff]
  %v55 = vld [vmem:[%s1 + $0x158] sm:$0xff]
  %v56 = vld [vmem:[%s1 + $0x160] sm:$0xff]
  %v57 = vld [vmem:[%s1 + $0x168] sm:$0xff]
  %v58 = vld [vmem:[%s1 + $0x170] sm:$0xff]
  %v59 = vld [vmem:[%s1 + $0x178] sm:$0xff]
  %v60 = vld [vmem:[%s1 + $0x180] sm:$0xff]
  %v61 = vld [vmem:[%s1 + $0x188] sm:$0xff]
  %v62 = vld [vmem:[%s1 + $0x190] sm:$0x1]
  %v63 = vlaneseq
  %v64 = vshrl.u32 %v63, 7
  %v65 = vsub.s32 0, %v64
  %v66 = vrot.slane %v28, %v65
  %67 = vmatprep.subr.mxu0 0.0
  %68 = vmatpush1.msra.mxu0 %v12
  %69 = vmatprep.subr.mxu0 0.0
  %70 = vmatpush1.msra.mxu0 %v13
  %71 = vmatprep.subr.mxu0 0.0
  %72 = vmatpush1.msra.mxu0 %v14
  %73 = vmatprep.subr.mxu0 0.0
  %74 = vmatpush1.msra.mxu0 %v15
  %75 = vmatprep.subr.mxu0 0.0
  %76 = vmatpush1.msra.mxu0 %v16
  %77 = vmatprep.subr.mxu0 0.0
  %78 = vmatpush1.msra.mxu0 %v17
  %79 = vmatprep.subr.mxu0 0.0
  %80 = vmatpush1.msra.mxu0 %v18
  %81 = vmatprep.subr.mxu0 0.0
  %82 = vmatpush1.msra.mxu0 %v19
  %83 = vmatprep.subr.mxu0 0.0
  %84 = vmatpush1.msra.mxu0 %v20
  %85 = vmatprep.subr.mxu0 0.0
  %86 = vmatpush1.msra.mxu0 %v21
  %87 = vmatprep.subr.mxu0 0.0
  %88 = vmatpush1.msra.mxu0 %v22
  %89 = vmatprep.subr.mxu0 0.0
  %90 = vmatpush1.msra.mxu0 %v23
  %91 = vmatprep.subr.mxu0 0.0
  %92 = vmatpush1.msra.mxu0 %v24
  %93 = vmatprep.subr.mxu0 0.0
  %94 = vmatpush1.msra.mxu0 %v25
  %95 = vmatprep.subr.mxu0 0.0
  %96 = vmatpush1.msra.mxu0 %v26
  %97 = vmatprep.subr.mxu0 0.0
  %98 = vmatpush1.msra.mxu0 %v27
  %99 = vmatprep.subr.mxu0 0.0
  %100 = vmatpush1.msra.mxu0 0.0
  %101 = vmatprep.subr.mxu0 0.0
  %102 = vmatpush1.msra.mxu0 0.0
  %103 = vmatprep.subr.mxu0 0.0
  %104 = vmatpush1.msra.mxu0 0.0
  %105 = vmatprep.subr.mxu0 0.0
  %106 = vmatpush1.msra.mxu0 0.0
  %107 = vmatprep.subr.mxu0 0.0
  %108 = vmatpush1.msra.mxu0 0.0
  %109 = vmatprep.subr.mxu0 0.0
  %110 = vmatpush1.msra.mxu0 0.0
  %111 = vmatprep.subr.mxu0 0.0
  %112 = vmatpush1.msra.mxu0 0.0
  %113 = vmatprep.subr.mxu0 0.0
  %114 = vmatpush1.msra.mxu0 0.0
  %115 = vmatprep.subr.mxu0 0.0
  %116 = vmatpush1.msra.mxu0 0.0
  %117 = vmatprep.subr.mxu0 0.0
  %118 = vmatpush1.msra.mxu0 0.0
  %119 = vmatprep.subr.mxu0 0.0
  %120 = vmatpush1.msra.mxu0 0.0
  %121 = vmatprep.subr.mxu0 0.0
  %122 = vmatpush1.msra.mxu0 0.0
  %123 = vmatprep.subr.mxu0 0.0
  %124 = vmatpush1.msra.mxu0 0.0
  %125 = vmatprep.subr.mxu0 0.0
  %126 = vmatpush1.msra.mxu0 0.0
  %127 = vmatprep.subr.mxu0 0.0
  %128 = vmatpush1.msra.mxu0 0.0
  %129 = vmatprep.subr.mxu0 0.0
  %130 = vmatpush1.msra.mxu0 0.0
  %131 = vmatprep.mubr.f32.mxu0 0.0
  %132 = vmatmul.mubr.f32.gmra.mrb[0].mxu0 %v11
  %v133 = vpop.f32.mrb[0].mxu0
  %v134 = vadd.f32 %v66, %v133
  %v135 = vpop.f32.mrb[0].mxu0
  %136 = vdwg.mxu0
  %v137 = vmax.f32 %v134, 0.0
  %v138 = vlaneseq
  %v139 = vshrl.u32 %v138, 7
  %v140 = vsub.s32 0, %v139
  %v141 = vrot.slane %v45, %v140
  %142 = vmatprep.subr.mxu0 0.0
  %143 = vmatpush1.msra.mxu0 %v29
  %144 = vmatprep.subr.mxu0 0.0
  %145 = vmatpush1.msra.mxu0 %v30
  %146 = vmatprep.subr.mxu0 0.0
  %147 = vmatpush1.msra.mxu0 %v31
  %148 = vmatprep.subr.mxu0 0.0
  %149 = vmatpush1.msra.mxu0 %v32
  %150 = vmatprep.subr.mxu0 0.0
  %151 = vmatpush1.msra.mxu0 %v33
  %152 = vmatprep.subr.mxu0 0.0
  %153 = vmatpush1.msra.mxu0 %v34
  %154 = vmatprep.subr.mxu0 0.0
  %155 = vmatpush1.msra.mxu0 %v35
  %156 = vmatprep.subr.mxu0 0.0
  %157 = vmatpush1.msra.mxu0 %v36
  %158 = vmatprep.subr.mxu0 0.0
  %159 = vmatpush1.msra.mxu0 %v37
  %160 = vmatprep.subr.mxu0 0.0
  %161 = vmatpush1.msra.mxu0 %v38
  %162 = vmatprep.subr.mxu0 0.0
  %163 = vmatpush1.msra.mxu0 %v39
  %164 = vmatprep.subr.mxu0 0.0
  %165 = vmatpush1.msra.mxu0 %v40
  %166 = vmatprep.subr.mxu0 0.0
  %167 = vmatpush1.msra.mxu0 %v41
  %168 = vmatprep.subr.mxu0 0.0
  %169 = vmatpush1.msra.mxu0 %v42
  %170 = vmatprep.subr.mxu0 0.0
  %171 = vmatpush1.msra.mxu0 %v43
  %172 = vmatprep.subr.mxu0 0.0
  %173 = vmatpush1.msra.mxu0 %v44
  %174 = vmatprep.subr.mxu0 0.0
  %175 = vmatpush1.msra.mxu0 0.0
  %176 = vmatprep.subr.mxu0 0.0
  %177 = vmatpush1.msra.mxu0 0.0
  %178 = vmatprep.subr.mxu0 0.0
  %179 = vmatpush1.msra.mxu0 0.0
  %180 = vmatprep.subr.mxu0 0.0
  %181 = vmatpush1.msra.mxu0 0.0
  %182 = vmatprep.subr.mxu0 0.0
  %183 = vmatpush1.msra.mxu0 0.0
  %184 = vmatprep.subr.mxu0 0.0
  %185 = vmatpush1.msra.mxu0 0.0
  %186 = vmatprep.subr.mxu0 0.0
  %187 = vmatpush1.msra.mxu0 0.0
  %188 = vmatprep.subr.mxu0 0.0
  %189 = vmatpush1.msra.mxu0 0.0
  %190 = vmatprep.subr.mxu0 0.0
  %191 = vmatpush1.msra.mxu0 0.0
  %192 = vmatprep.subr.mxu0 0.0
  %193 = vmatpush1.msra.mxu0 0.0
  %194 = vmatprep.subr.mxu0 0.0
  %195 = vmatpush1.msra.mxu0 0.0
  %196 = vmatprep.subr.mxu0 0.0
  %197 = vmatpush1.msra.mxu0 0.0
  %198 = vmatprep.subr.mxu0 0.0
  %199 = vmatpush1.msra.mxu0 0.0
  %200 = vmatprep.subr.mxu0 0.0
  %201 = vmatpush1.msra.mxu0 0.0
  %202 = vmatprep.subr.mxu0 0.0
  %203 = vmatpush1.msra.mxu0 0.0
  %204 = vmatprep.subr.mxu0 0.0
  %205 = vmatpush1.msra.mxu0 0.0
  %206 = vmatprep.mubr.f32.mxu0 0.0
  %207 = vmatmul.mubr.f32.gmra.mrb[0].mxu0 %v137
  %v208 = vpop.f32.mrb[0].mxu0
  %v209 = vadd.f32 %v141, %v208
  %v210 = vpop.f32.mrb[0].mxu0
  %211 = vdwg.mxu0
  %v212 = vmax.f32 %v209, 0.0
  %v213 = vlaneseq
  %v214 = vshrl.u32 %v213, 7
  %v215 = vsub.s32 0, %v214
  %v216 = vrot.slane %v62, %v215
  %217 = vmatprep.subr.mxu0 0.0
  %218 = vmatpush1.msra.mxu0 %v46
  %219 = vmatprep.subr.mxu0 0.0
  %220 = vmatpush1.msra.mxu0 %v47
  %221 = vmatprep.subr.mxu0 0.0
  %222 = vmatpush1.msra.mxu0 %v48
  %223 = vmatprep.subr.mxu0 0.0
  %224 = vmatpush1.msra.mxu0 %v49
  %225 = vmatprep.subr.mxu0 0.0
  %226 = vmatpush1.msra.mxu0 %v50
  %227 = vmatprep.subr.mxu0 0.0
  %228 = vmatpush1.msra.mxu0 %v51
  %229 = vmatprep.subr.mxu0 0.0
  %230 = vmatpush1.msra.mxu0 %v52
  %231 = vmatprep.subr.mxu0 0.0
  %232 = vmatpush1.msra.mxu0 %v53
  %233 = vmatprep.subr.mxu0 0.0
  %234 = vmatpush1.msra.mxu0 %v54
  %235 = vmatprep.subr.mxu0 0.0
  %236 = vmatpush1.msra.mxu0 %v55
  %237 = vmatprep.subr.mxu0 0.0
  %238 = vmatpush1.msra.mxu0 %v56
  %239 = vmatprep.subr.mxu0 0.0
  %240 = vmatpush1.msra.mxu0 %v57
  %241 = vmatprep.subr.mxu0 0.0
  %242 = vmatpush1.msra.mxu0 %v58
  %243 = vmatprep.subr.mxu0 0.0
  %244 = vmatpush1.msra.mxu0 %v59
  %245 = vmatprep.subr.mxu0 0.0
  %246 = vmatpush1.msra.mxu0 %v60
  %247 = vmatprep.subr.mxu0 0.0
  %248 = vmatpush1.msra.mxu0 %v61
  %249 = vmatprep.subr.mxu0 0.0
  %250 = vmatpush1.msra.mxu0 0.0
  %251 = vmatprep.subr.mxu0 0.0
  %252 = vmatpush1.msra.mxu0 0.0
  %253 = vmatprep.subr.mxu0 0.0
  %254 = vmatpush1.msra.mxu0 0.0
  %255 = vmatprep.subr.mxu0 0.0
  %256 = vmatpush1.msra.mxu0 0.0
  %257 = vmatprep.subr.mxu0 0.0
  %258 = vmatpush1.msra.mxu0 0.0
  %259 = vmatprep.subr.mxu0 0.0
  %260 = vmatpush1.msra.mxu0 0.0
  %261 = vmatprep.subr.mxu0 0.0
  %262 = vmatpush1.msra.mxu0 0.0
  %263 = vmatprep.subr.mxu0 0.0
  %264 = vmatpush1.msra.mxu0 0.0
  %265 = vmatprep.subr.mxu0 0.0
  %266 = vmatpush1.msra.mxu0 0.0
  %267 = vmatprep.subr.mxu0 0.0
  %268 = vmatpush1.msra.mxu0 0.0
  %269 = vmatprep.subr.mxu0 0.0
  %270 = vmatpush1.msra.mxu0 0.0
  %271 = vmatprep.subr.mxu0 0.0
  %272 = vmatpush1.msra.mxu0 0.0
  %273 = vmatprep.subr.mxu0 0.0
  %274 = vmatpush1.msra.mxu0 0.0
  %275 = vmatprep.subr.mxu0 0.0
  %276 = vmatpush1.msra.mxu0 0.0
  %277 = vmatprep.subr.mxu0 0.0
  %278 = vmatpush1.msra.mxu0 0.0
  %279 = vmatprep.subr.mxu0 0.0
  %280 = vmatpush1.msra.mxu0 0.0
  %281 = vmatprep.mubr.f32.mxu0 0.0
  %282 = vmatmul.mubr.f32.gmra.mrb[0].mxu0 %v212
  %v283 = vpop.f32.mrb[0].mxu0
  %v284 = vadd.f32 %v216, %v283
  %v285 = vpop.f32.mrb[0].mxu0
  %286 = vdwg.mxu0
  %287 = vmax.xlane.f32.xlu0 %v284
  %v288 = vpop.xlane.xlu0 %287
  %v289 = vsub.f32 %v284, %v288
  %v290 = vmul.f32 %v289, 1.442695
  %v291 = vpow.pop %v290
  %292 = vadd.xlane.f32.xlu0 %v291
  %v293 = vpop.xlane.xlu0 %292
  %v294 = vlog2.pop %v293
  %v295 = vmul.f32 %v294, 0.6931472
  %v296 = vsub.f32 %v289, %v295
  %297 = vst [vmem:[%s2] sm:$0xff] %v296
  // Predicated region
  $region10: #{mlp2layer_forward.1} parent=0 // pred_check
    _
  $region11: #{mlp2layer_forward.1} parent=0 // pred_check_branch
    %299 = sbr.rel (0) target = $region13
  $region12: #{mlp2layer_forward.1} parent=0 // pred_region
    _
  $region13: #{mlp2layer_forward.1} parent=0 // pred_fallthru
    _
  // Predicated region
  $region14: #{mlp2layer_forward.1} parent=0 // pred_check
    _
  $region15: #{mlp2layer_forward.1} parent=0 // pred_check_branch
    %301 = sbr.rel (0) target = $region17
  $region16: #{mlp2layer_forward.1} parent=0 // pred_region
    _
  $region17: #{mlp2layer_forward.1} parent=0 // pred_fallthru
    _

</llo_original>
